<compile_context>
chip_gen: v7x
topology: tpu7x:2x2x1
jax: 0.10.0
libtpu: 0.0.40
codegen_flags: <defaults>
</compile_context>

<pallas_src>
import functools

import jax
import jax.numpy as jnp
from jax.experimental import pallas as pl
from jax.experimental.pallas import tpu as pltpu

BN_EPS = 1e-5
LEAKY_SLOPE = 0.1


# ----------------------------------------------------------------------------
# Kernel
# ----------------------------------------------------------------------------
def _discriminator_kernel(n_hidden, x_ref, *refs):
    """refs = [w1, b1, ..., w_nh, b_nh, w_out, b_out, out_ref].

    Activations are kept as (features, TB): the batch tile occupies the lane
    dimension, so all bias broadcasts are lane-wise and the final sigmoid is
    stored as a dense (1, TB) row.
    """
    out_ref = refs[-1]
    params = refs[:-1]

    # Layer 1: (H1, D0) @ (D0, TB) -> (H1, TB).  x arrives pre-transposed and
    # lane-dense, so this is a plain matmul (no NT dot_general / relayout).
    w0, b0 = params[0], params[1]
    h = jnp.dot(w0[...], x_ref[...],
                preferred_element_type=jnp.float32) + b0[...]
    h = jnp.maximum(h, LEAKY_SLOPE * h)      # LeakyReLU(0.1)
    # Dropout(0.4): identity in eval mode.

    idx = 2
    for _ in range(1, n_hidden):
        w, b = params[idx], params[idx + 1]
        idx += 2
        w_val = w[...]
        h = jnp.dot(w_val, h.astype(w_val.dtype),
                    preferred_element_type=jnp.float32) + b[...]
        h = jnp.maximum(h, LEAKY_SLOPE * h)

    # Output layer (out_features == 1): elementwise mul + sublane reduction
    # instead of an M=1 matmul; result is already lane-dense (1, TB).
    w_out, b_out = params[idx], params[idx + 1]
    logits = jnp.sum(w_out[...] * h, axis=0, keepdims=True) + b_out[...]
    out_ref[...] = jax.nn.sigmoid(logits)


# ----------------------------------------------------------------------------
# Parameters (PyTorch layout) + one-time folding (hoisted out of the forward)
# ----------------------------------------------------------------------------
def make_params(key, input_size, sequence, dtype=jnp.float32):
    """PyTorch-layout params: Linear W (dout, din), b (dout,); BN vecs (dout,)."""
    dims_in = [input_size * sequence, input_size * 16, input_size * 8,
               input_size * 4, input_size * 2]
    dims_out = [input_size * 16, input_size * 8, input_size * 4,
                input_size * 2, 1]
    params = []
    for li, (din, dout) in enumerate(zip(dims_in, dims_out)):
        kw, kb, kg, kbe, km, kv = jax.random.split(
            jax.random.fold_in(key, li), 6)
        w = jax.random.normal(kw, (dout, din), dtype) * 0.05
        b = jax.random.normal(kb, (dout,), dtype) * 0.05
        if li < len(dims_in) - 1:   # hidden layers have BatchNorm1d
            gamma = 1.0 + 0.1 * jax.random.normal(kg, (dout,), dtype)
            beta = 0.1 * jax.random.normal(kbe, (dout,), dtype)
            rmean = 0.1 * jax.random.normal(km, (dout,), dtype)
            rvar = 1.0 + 0.1 * jax.random.uniform(kv, (dout,), dtype)
            params.append((w, b, gamma, beta, rmean, rvar))
        else:
            params.append((w, b))
    return params


def fold_params(params, compute_dtype=jnp.bfloat16):
    """Fold eval-mode BatchNorm into each hidden Linear; cast hot path to bf16.

    Call ONCE at parameter-load time (not inside the jitted forward) so the
    read/scale/cast pass over the weights is not repeated per inference call.
    """
    folded = []
    for (w, b, gamma, beta, rmean, rvar) in params[:-1]:
        scale = gamma * jax.lax.rsqrt(rvar + BN_EPS)                 # (dout,)
        wf = (w * scale[:, None]).astype(compute_dtype)              # (dout, din)
        bf = ((b - rmean) * scale + beta).astype(jnp.float32)[:, None]  # (dout, 1)
        folded.append((wf, bf))
    w_out, b_out = params[-1]
    folded.append((w_out.astype(jnp.float32).T,                      # (H_last, 1)
                   b_out.astype(jnp.float32)[:, None]))              # (1, 1)
    return tuple(folded)


# ----------------------------------------------------------------------------
# Tiling / capability helpers
# ----------------------------------------------------------------------------
def _round_up(n, m):
    return ((n + m - 1) // m) * m


def _pick_batch_tile(B):
    """Batch tile: always a multiple of 128 (lane-dense loads/stores).

    Prefer tiles that keep padding waste <~10% and give >=2 grid steps (so the
    'parallel' batch axis can split across v7x's two TensorCores); grow to
    256/512/1024 only when B is large enough that padding stays negligible.
    """
    if B <= 256:
        return 128
    for tb in (1024, 512, 256):
        padded = _round_up(B, tb)
        if padded // tb >= 2 and (padded - B) <= 0.10 * B:
            return tb
    return 128


def _single_buffer_params_supported():
    """Probe whether pipeline_mode=pl.Buffered(1) (no double-buffering for
    grid-constant parameter blocks) is supported by this runtime."""
    def _probe_kernel(x_ref, o_ref):
        o_ref[...] = x_ref[...] + 1.0

    try:
        out = pl.pallas_call(
            _probe_kernel,
            grid=(2,),
            in_specs=[pl.BlockSpec((8, 128), lambda i: (0, 0),
                                   pipeline_mode=pl.Buffered(buffer_count=1))],
            out_specs=pl.BlockSpec((8, 128), lambda i: (i, 0)),
            out_shape=jax.ShapeDtypeStruct((16, 128), jnp.float32),
        )(jnp.zeros((8, 128), jnp.float32))
        out = jax.block_until_ready(out)
        return bool(jnp.all(out == 1.0))
    except Exception:
        return False


# ----------------------------------------------------------------------------
# Forward
# ----------------------------------------------------------------------------
@functools.partial(
    jax.jit,
    static_argnames=("input_size", "sequence", "single_buffer_params"))
def discriminator_forward(x, folded, *, input_size, sequence,
                          single_buffer_params=False):
    B = x.shape[0]
    D0 = input_size * sequence

    TB = _pick_batch_tile(B)
    B_pad = _round_up(B, TB)
    n_tiles = B_pad // TB

    # One fused XLA op: reshape + bf16 cast + transpose + pad -> (D0, B_pad).
    # The kernel then sees lane-dense (D0, TB) blocks (last dim multiple of
    # 128) with no extra per-tile relayout feeding the MXU.
    x_t = jnp.pad(x.reshape(B, D0).astype(jnp.bfloat16).T,
                  ((0, 0), (0, B_pad - B)))

    n_hidden = len(folded) - 1

    # Resident parameters: constant index maps; request single buffering when
    # the runtime supports it (halves parameter VMEM footprint as the model
    # scales — matters on v7x's 64 MiB / v5e's small default scoped VMEM).
    param_spec_kwargs = (
        dict(pipeline_mode=pl.Buffered(buffer_count=1))
        if single_buffer_params else {})

    flat_args = [x_t]
    in_specs = [pl.BlockSpec((D0, TB), lambda i: (0, i))]
    for (w, b) in folded:
        flat_args += [w, b]
        in_specs += [
            pl.BlockSpec(w.shape, lambda i: (0, 0), **param_spec_kwargs),
            pl.BlockSpec(b.shape, lambda i: (0, 0), **param_spec_kwargs),
        ]

    # VMEM budget derived from the actual residents (weights + x / out tiles +
    # f32 activations), with headroom.  Never below 32 MiB (raises v5e's
    # 16 MiB default), never above 64 MiB (v7x physical per-TC VMEM).
    param_bytes = sum(int(w.size) * w.dtype.itemsize +
                      int(b.size) * b.dtype.itemsize for (w, b) in folded)
    param_bufs = 1 if single_buffer_params else 2
    h1 = folded[0][0].shape[0]
    act_bytes = 4 * h1 * TB * 4                 # f32 (H, TB) temporaries (bound)
    vmem_est = (param_bufs * param_bytes
                + 2 * (D0 * TB * 2)             # double-buffered bf16 x tile
                + 2 * (TB * 4)                  # double-buffered f32 out tile
                + act_bytes)
    vmem_limit = int(min(64 << 20, max(32 << 20, 4 * vmem_est)))

    cost = pl.CostEstimate(
        flops=2 * B_pad * sum(int(w.size) for (w, _) in folded),
        transcendentals=B_pad,                  # sigmoid
        bytes_accessed=int(x_t.size) * 2 + param_bytes + B_pad * 4)

    out = pl.pallas_call(
        functools.partial(_discriminator_kernel, n_hidden),
        out_shape=jax.ShapeDtypeStruct((1, B_pad), jnp.float32),
        grid=(n_tiles,),
        in_specs=in_specs,
        out_specs=pl.BlockSpec((1, TB), lambda i: (0, i)),
        compiler_params=pltpu.CompilerParams(
            dimension_semantics=("parallel",),
            vmem_limit_bytes=vmem_limit),
        cost_estimate=cost,
    )(*flat_args)

    # view(-1, 1).squeeze(dim=1) -> (B,); drop batch padding.
    return out[0, :B]


# ----------------------------------------------------------------------------
# References
# ----------------------------------------------------------------------------
def reference_forward(x, params, *, input_size, sequence):
    """Pure-JAX f32 eval-mode reference matching the PyTorch module."""
    B = x.shape[0]
    h = x.reshape(B, input_size * sequence).astype(jnp.float32)
    for (w, b, g, be, rm, rv) in params[:-1]:
        h = h @ w.T + b
        h = (h - rm) / jnp.sqrt(rv + BN_EPS) * g + be
        h = jnp.where(h >= 0, h, LEAKY_SLOPE * h)
    w, b = params[-1]
    logits = h @ w.T + b
    return jax.nn.sigmoid(logits)[:, 0]


def kernel_math_reference(x, folded, *, input_size, sequence):
    """Pure-JAX reference reproducing the kernel's exact folded/bf16 math."""
    B = x.shape[0]
    xt = x.reshape(B, input_size * sequence).astype(jnp.bfloat16).T  # (D0, B)
    w, b = folded[0]
    h = jnp.dot(w, xt, preferred_element_type=jnp.float32) + b
    h = jnp.maximum(h, LEAKY_SLOPE * h)
    for (w, b) in folded[1:-1]:
        h = jnp.dot(w, h.astype(jnp.bfloat16),
                    preferred_element_type=jnp.float32) + b
        h = jnp.maximum(h, LEAKY_SLOPE * h)
    w, b = folded[-1]
    logits = jnp.sum(w * h, axis=0, keepdims=True) + b
    return jax.nn.sigmoid(logits)[0]


# ----------------------------------------------------------------------------
if __name__ == "__main__":
    input_size = 4
    sequence = 8

    key = jax.random.PRNGKey(0)
    kx, kp, kx2 = jax.random.split(key, 3)
    params = make_params(kp, input_size, sequence)

    # BN folding / bf16 cast done once, outside the jitted forward.
    folded = fold_params(params)
    single_buf = _single_buffer_params_supported()

    # Test both the tiny single-tile path (B=2 -> TB=128, 1 tile) and the
    # multi-tile padded path (B=600 -> TB=128, 5 tiles, pad to 640).
    for batch, kk in ((2, kx), (600, kx2)):
        x = jax.random.normal(kk, (batch, input_size, sequence), jnp.float32)
        out = discriminator_forward(x, folded,
                                    input_size=input_size, sequence=sequence,
                                    single_buffer_params=single_buf)
        out = jax.block_until_ready(out)
        assert out.shape == (batch,), out.shape

        ref_exact = kernel_math_reference(x, folded,
                                          input_size=input_size,
                                          sequence=sequence)
        ref_f32 = reference_forward(x, params,
                                    input_size=input_size, sequence=sequence)
        assert jnp.allclose(out, ref_exact, atol=5e-4, rtol=0), (
            batch, float(jnp.max(jnp.abs(out - ref_exact))))
        assert jnp.allclose(out, ref_f32, atol=2e-2, rtol=0), (
            batch, float(jnp.max(jnp.abs(out - ref_f32))))

    print("KERNEL_OK")
</pallas_src>

<mosaic_0001>
module attributes {stable_mosaic.version = 11 : i64} {
  func.func @_probe_kernel(%arg0: i32, %arg1: memref<8x128xf32, #tpu.memory_space<vmem>>, %arg2: memref<8x128xf32, #tpu.memory_space<vmem>>) attributes {dimension_semantics = [#tpu.dimension_semantics<arbitrary>], iteration_bounds = array<i64: 2>, scalar_prefetch = 0 : i64, scratch_operands = 0 : i64, tpu.core_type = #tpu.core_type<tc>, window_params = [{pipeline_mode = #tpu.pipeline_mode<synchronous>, transform_indices = @transform_0, window_bounds = array<i64: 8, 128>}, {transform_indices = @transform_1, window_bounds = array<i64: 8, 128>}]} {
    %c0 = arith.constant 0 : index
    %c0_0 = arith.constant 0 : index
    %0 = vector.load %arg1[%c0, %c0_0] : memref<8x128xf32, #tpu.memory_space<vmem>>, vector<8x128xf32>
    %cst = arith.constant 1.000000e+00 : f32
    %1 = vector.broadcast %cst : f32 to vector<8x128xf32>
    %2 = arith.addf %0, %1 : vector<8x128xf32>
    %c0_1 = arith.constant 0 : index
    %c0_2 = arith.constant 0 : index
    %3 = vector.load %arg2[%c0_1, %c0_2] : memref<8x128xf32, #tpu.memory_space<vmem>>, vector<8x128xf32>
    tpu.vector_store %arg2[%c0_1, %c0_2], %2 {strides = array<i32>} : memref<8x128xf32, #tpu.memory_space<vmem>>, vector<8x128xf32>,
    return
  }
  func.func @transform_0(%arg0: i32) -> (i32, i32) {
    %c0_i32 = arith.constant 0 : i32
    %c0_i32_0 = arith.constant 0 : i32
    %c0_i32_1 = arith.constant 0 : i32
    return %c0_i32, %c0_i32_0 : i32, i32
  }
  func.func @transform_1(%arg0: i32) -> (i32, i32) {
    %c0_i32 = arith.constant 0 : i32
    %c0_i32_0 = arith.constant 0 : i32
    return %arg0, %c0_i32 : i32, i32
  }
}

module attributes {stable_mosaic.version = 11 : i64} {
  func.func @_discriminator_kernel(%arg0: i32, %arg1: memref<32x128xbf16, #tpu.memory_space<vmem>>, %arg2: memref<64x32xbf16, #tpu.memory_space<vmem>>, %arg3: memref<64x1xf32, #tpu.memory_space<vmem>>, %arg4: memref<32x64xbf16, #tpu.memory_space<vmem>>, %arg5: memref<32x1xf32, #tpu.memory_space<vmem>>, %arg6: memref<16x32xbf16, #tpu.memory_space<vmem>>, %arg7: memref<16x1xf32, #tpu.memory_space<vmem>>, %arg8: memref<8x16xbf16, #tpu.memory_space<vmem>>, %arg9: memref<8x1xf32, #tpu.memory_space<vmem>>, %arg10: memref<8x1xf32, #tpu.memory_space<vmem>>, %arg11: memref<1x1xf32, #tpu.memory_space<vmem>>, %arg12: memref<1x128xf32, #tpu.memory_space<vmem>>) attributes {dimension_semantics = [#tpu.dimension_semantics<parallel>], iteration_bounds = array<i64: 1>, scalar_prefetch = 0 : i64, scratch_operands = 0 : i64, tpu.core_type = #tpu.core_type<tc>, window_params = [{transform_indices = @transform_0, window_bounds = array<i64: 32, 128>}, {pipeline_mode = #tpu.pipeline_mode<synchronous>, transform_indices = @transform_1, window_bounds = array<i64: 64, 32>}, {pipeline_mode = #tpu.pipeline_mode<synchronous>, transform_indices = @transform_2, window_bounds = array<i64: 64, 1>}, {pipeline_mode = #tpu.pipeline_mode<synchronous>, transform_indices = @transform_3, window_bounds = array<i64: 32, 64>}, {pipeline_mode = #tpu.pipeline_mode<synchronous>, transform_indices = @transform_4, window_bounds = array<i64: 32, 1>}, {pipeline_mode = #tpu.pipeline_mode<synchronous>, transform_indices = @transform_5, window_bounds = array<i64: 16, 32>}, {pipeline_mode = #tpu.pipeline_mode<synchronous>, transform_indices = @transform_6, window_bounds = array<i64: 16, 1>}, {pipeline_mode = #tpu.pipeline_mode<synchronous>, transform_indices = @transform_7, window_bounds = array<i64: 8, 16>}, {pipeline_mode = #tpu.pipeline_mode<synchronous>, transform_indices = @transform_8, window_bounds = array<i64: 8, 1>}, {pipeline_mode = #tpu.pipeline_mode<synchronous>, transform_indices = @transform_9, window_bounds = array<i64: 8, 1>}, {pipeline_mode = #tpu.pipeline_mode<synchronous>, transform_indices = @transform_10, window_bounds = array<i64: 1, 1>}, {transform_indices = @transform_11, window_bounds = array<i64: 1, 128>}]} {
    %c0 = arith.constant 0 : index
    %c0_0 = arith.constant 0 : index
    %0 = vector.load %arg2[%c0, %c0_0] : memref<64x32xbf16, #tpu.memory_space<vmem>>, vector<64x32xbf16>
    %c0_1 = arith.constant 0 : index
    %c0_2 = arith.constant 0 : index
    %1 = vector.load %arg1[%c0_1, %c0_2] : memref<32x128xbf16, #tpu.memory_space<vmem>>, vector<32x128xbf16>
    %cst = arith.constant dense<0.000000e+00> : vector<64x128xf32>
    %2 = tpu.matmul %0, %1, %cst {dimension_numbers = #tpu.dot_dimension_numbers<[1], [0], [0], [1], [0, 0, 1, 1], [], []>} : vector<64x32xbf16>, vector<32x128xbf16>, vector<64x128xf32> -> vector<64x128xf32>
    %c0_3 = arith.constant 0 : index
    %c0_4 = arith.constant 0 : index
    %3 = vector.load %arg3[%c0_3, %c0_4] : memref<64x1xf32, #tpu.memory_space<vmem>>, vector<64x1xf32>
    %4 = vector.broadcast %3 : vector<64x1xf32> to vector<64x128xf32>
    %5 = arith.addf %2, %4 : vector<64x128xf32>
    %cst_5 = arith.constant 1.000000e-01 : f32
    %6 = vector.broadcast %cst_5 : f32 to vector<64x128xf32>
    %7 = arith.mulf %6, %5 : vector<64x128xf32>
    %8 = arith.maximumf %5, %7 : vector<64x128xf32>
    %c0_6 = arith.constant 0 : index
    %c0_7 = arith.constant 0 : index
    %9 = vector.load %arg4[%c0_6, %c0_7] : memref<32x64xbf16, #tpu.memory_space<vmem>>, vector<32x64xbf16>
    %10 = arith.truncf %8 : vector<64x128xf32> to vector<64x128xbf16>
    %cst_8 = arith.constant dense<0.000000e+00> : vector<32x128xf32>
    %11 = tpu.matmul %9, %10, %cst_8 {dimension_numbers = #tpu.dot_dimension_numbers<[1], [0], [0], [1], [0, 0, 1, 1], [], []>} : vector<32x64xbf16>, vector<64x128xbf16>, vector<32x128xf32> -> vector<32x128xf32>
    %c0_9 = arith.constant 0 : index
    %c0_10 = arith.constant 0 : index
    %12 = vector.load %arg5[%c0_9, %c0_10] : memref<32x1xf32, #tpu.memory_space<vmem>>, vector<32x1xf32>
    %13 = vector.broadcast %12 : vector<32x1xf32> to vector<32x128xf32>
    %14 = arith.addf %11, %13 : vector<32x128xf32>
    %cst_11 = arith.constant 1.000000e-01 : f32
    %15 = vector.broadcast %cst_11 : f32 to vector<32x128xf32>
    %16 = arith.mulf %15, %14 : vector<32x128xf32>
    %17 = arith.maximumf %14, %16 : vector<32x128xf32>
    %c0_12 = arith.constant 0 : index
    %c0_13 = arith.constant 0 : index
    %18 = vector.load %arg6[%c0_12, %c0_13] : memref<16x32xbf16, #tpu.memory_space<vmem>>, vector<16x32xbf16>
    %19 = arith.truncf %17 : vector<32x128xf32> to vector<32x128xbf16>
    %cst_14 = arith.constant dense<0.000000e+00> : vector<16x128xf32>
    %20 = tpu.matmul %18, %19, %cst_14 {dimension_numbers = #tpu.dot_dimension_numbers<[1], [0], [0], [1], [0, 0, 1, 1], [], []>} : vector<16x32xbf16>, vector<32x128xbf16>, vector<16x128xf32> -> vector<16x128xf32>
    %c0_15 = arith.constant 0 : index
    %c0_16 = arith.constant 0 : index
    %21 = vector.load %arg7[%c0_15, %c0_16] : memref<16x1xf32, #tpu.memory_space<vmem>>, vector<16x1xf32>
    %22 = vector.broadcast %21 : vector<16x1xf32> to vector<16x128xf32>
    %23 = arith.addf %20, %22 : vector<16x128xf32>
    %cst_17 = arith.constant 1.000000e-01 : f32
    %24 = vector.broadcast %cst_17 : f32 to vector<16x128xf32>
    %25 = arith.mulf %24, %23 : vector<16x128xf32>
    %26 = arith.maximumf %23, %25 : vector<16x128xf32>
    %c0_18 = arith.constant 0 : index
    %c0_19 = arith.constant 0 : index
    %27 = vector.load %arg8[%c0_18, %c0_19] : memref<8x16xbf16, #tpu.memory_space<vmem>>, vector<8x16xbf16>
    %28 = arith.truncf %26 : vector<16x128xf32> to vector<16x128xbf16>
    %cst_20 = arith.constant dense<0.000000e+00> : vector<8x128xf32>
    %29 = tpu.matmul %27, %28, %cst_20 {dimension_numbers = #tpu.dot_dimension_numbers<[1], [0], [0], [1], [0, 0, 1, 1], [], []>} : vector<8x16xbf16>, vector<16x128xbf16>, vector<8x128xf32> -> vector<8x128xf32>
    %c0_21 = arith.constant 0 : index
    %c0_22 = arith.constant 0 : index
    %30 = vector.load %arg9[%c0_21, %c0_22] : memref<8x1xf32, #tpu.memory_space<vmem>>, vector<8x1xf32>
    %31 = vector.broadcast %30 : vector<8x1xf32> to vector<8x128xf32>
    %32 = arith.addf %29, %31 : vector<8x128xf32>
    %cst_23 = arith.constant 1.000000e-01 : f32
    %33 = vector.broadcast %cst_23 : f32 to vector<8x128xf32>
    %34 = arith.mulf %33, %32 : vector<8x128xf32>
    %35 = arith.maximumf %32, %34 : vector<8x128xf32>
    %c0_24 = arith.constant 0 : index
    %c0_25 = arith.constant 0 : index
    %36 = vector.load %arg10[%c0_24, %c0_25] : memref<8x1xf32, #tpu.memory_space<vmem>>, vector<8x1xf32>
    %37 = vector.broadcast %36 : vector<8x1xf32> to vector<8x128xf32>
    %38 = arith.mulf %37, %35 : vector<8x128xf32>
    %cst_26 = arith.constant dense<0.000000e+00> : vector<128xf32>
    %39 = vector.multi_reduction <add>, %38, %cst_26 [0] : vector<8x128xf32> to vector<128xf32>
    %40 = vector.shape_cast %39 : vector<128xf32> to vector<1x128xf32>
    %c0_27 = arith.constant 0 : index
    %c0_28 = arith.constant 0 : index
    %41 = vector.load %arg11[%c0_27, %c0_28] : memref<1x1xf32, #tpu.memory_space<vmem>>, vector<1x1xf32>
    %42 = vector.broadcast %41 : vector<1x1xf32> to vector<1x128xf32>
    %43 = arith.addf %40, %42 : vector<1x128xf32>
    %44 = arith.negf %43 : vector<1x128xf32>
    %45 = math.exp %44 : vector<1x128xf32>
    %cst_29 = arith.constant 1.000000e+00 : f32
    %46 = vector.broadcast %cst_29 : f32 to vector<1x128xf32>
    %47 = arith.addf %46, %45 : vector<1x128xf32>
    %48 = arith.divf %46, %47 : vector<1x128xf32>
    %c0_30 = arith.constant 0 : index
    %c0_31 = arith.constant 0 : index
    %49 = vector.load %arg12[%c0_30, %c0_31] : memref<1x128xf32, #tpu.memory_space<vmem>>, vector<1x128xf32>
    tpu.vector_store %arg12[%c0_30, %c0_31], %48 {strides = array<i32>} : memref<1x128xf32, #tpu.memory_space<vmem>>, vector<1x128xf32>,
    return
  }
  func.func @transform_0(%arg0: i32) -> (i32, i32) {
    %c0_i32 = arith.constant 0 : i32
    %c0_i32_0 = arith.constant 0 : i32
    return %c0_i32, %arg0 : i32, i32
  }
  func.func @transform_1(%arg0: i32) -> (i32, i32) {
    %c0_i32 = arith.constant 0 : i32
    %c0_i32_0 = arith.constant 0 : i32
    %c0_i32_1 = arith.constant 0 : i32
    return %c0_i32, %c0_i32_0 : i32, i32
  }
  func.func @transform_2(%arg0: i32) -> (i32, i32) {
    %c0_i32 = arith.constant 0 : i32
    %c0_i32_0 = arith.constant 0 : i32
    %c0_i32_1 = arith.constant 0 : i32
    return %c0_i32, %c0_i32_0 : i32, i32
  }
  func.func @transform_3(%arg0: i32) -> (i32, i32) {
    %c0_i32 = arith.constant 0 : i32
    %c0_i32_0 = arith.constant 0 : i32
    %c0_i32_1 = arith.constant 0 : i32
    return %c0_i32, %c0_i32_0 : i32, i32
  }
  func.func @transform_4(%arg0: i32) -> (i32, i32) {
    %c0_i32 = arith.constant 0 : i32
    %c0_i32_0 = arith.constant 0 : i32
    %c0_i32_1 = arith.constant 0 : i32
    return %c0_i32, %c0_i32_0 : i32, i32
  }
  func.func @transform_5(%arg0: i32) -> (i32, i32) {
    %c0_i32 = arith.constant 0 : i32
    %c0_i32_0 = arith.constant 0 : i32
    %c0_i32_1 = arith.constant 0 : i32
    return %c0_i32, %c0_i32_0 : i32, i32
  }
  func.func @transform_6(%arg0: i32) -> (i32, i32) {
    %c0_i32 = arith.constant 0 : i32
    %c0_i32_0 = arith.constant 0 : i32
    %c0_i32_1 = arith.constant 0 : i32
    return %c0_i32, %c0_i32_0 : i32, i32
  }
  func.func @transform_7(%arg0: i32) -> (i32, i32) {
    %c0_i32 = arith.constant 0 : i32
    %c0_i32_0 = arith.constant 0 : i32
    %c0_i32_1 = arith.constant 0 : i32
    return %c0_i32, %c0_i32_0 : i32, i32
  }
  func.func @transform_8(%arg0: i32) -> (i32, i32) {
    %c0_i32 = arith.constant 0 : i32
    %c0_i32_0 = arith.constant 0 : i32
    %c0_i32_1 = arith.constant 0 : i32
    return %c0_i32, %c0_i32_0 : i32, i32
  }
  func.func @transform_9(%arg0: i32) -> (i32, i32) {
    %c0_i32 = arith.constant 0 : i32
    %c0_i32_0 = arith.constant 0 : i32
    %c0_i32_1 = arith.constant 0 : i32
    return %c0_i32, %c0_i32_0 : i32, i32
  }
  func.func @transform_10(%arg0: i32) -> (i32, i32) {
    %c0_i32 = arith.constant 0 : i32
    %c0_i32_0 = arith.constant 0 : i32
    %c0_i32_1 = arith.constant 0 : i32
    return %c0_i32, %c0_i32_0 : i32, i32
  }
  func.func @transform_11(%arg0: i32) -> (i32, i32) {
    %c0_i32 = arith.constant 0 : i32
    %c0_i32_0 = arith.constant 0 : i32
    return %c0_i32, %arg0 : i32, i32
  }
}

</mosaic_0001>

<llo_original>
// kernel: tpu_custom_call.1
$region0: #{tpu_custom_call.1}
  #allocation0 [shape = 'u32[]', space=smem, size = 0x4, offset = 0x4, fixed_abs, tag = 'smem constant byte address 0x4 - core index']
  #allocation1 [shape = 'u32[144,128]{1,0:T(1,128)}', space=vmem, size = 0x12000, scoped, tag = 'internal scratch']
  %s0 = inlined_call_operand.hbm [shape: f32[8,128], index: 0, kind: input, shape index: {}]
  %s1 = inlined_call_operand.hbm [shape: f32[16,128], index: 1, kind: output, shape index: {}]
  %s2 = sld [smem:[#allocation0]]
  $region41: #{tpu_custom_call.1} parent=0
    _
  %s4 = ssub.s32 1, %s2
  %s5 = scalar_select 0, %s4, %s2
  $region1: #{tpu_custom_call.1} parent=0
    #allocation2 [shape = 'u8[4096]{0}', space=vmem, size = 0x1000, scoped, tag = 'input window, operand 0, single buffered']
    #allocation3 [shape = 's32[2]{0}', space=sflag, size = 0x8, scoped, tag = 'scoped memory for tpu_custom_call.1']
    #allocation4 [shape = 's32[2]{0}', space=sflag, size = 0x8, scoped, tag = 'scoped memory for tpu_custom_call.1']
    #allocation5 [shape = 'u8[8192]{0}', space=vmem, size = 0x2000, scoped, tag = 'output window, operand 0']
    %6 = vsyncpa [#allocation3], 0
    %7 = vsyncpa [#allocation4], 0
    %s8 = scalar_lea.sflag [#allocation4], 1
    %9 = vsyncpa %s8, 0
    loop: start=0, step=1, limit=4
    $region2: #{tpu_custom_call.1} parent=1 // loop_pre_header
      _
    $region3: #{tpu_custom_call.1} parent=1 // loop_header
      %s11 = sphi 0, %s15
      %p12 = scmp.ge.s32.totalorder %s11, 4
      %s19 = sphi 0, %s19
      %s21 = sphi 0, %s19
      %s22 = sphi 0, %s21
      %s36 = sphi 0, %s22
      %s42 = sphi 0, %s44
      %s45 = sphi 0, %s42
      %s46 = sphi 0, %s45
      %s62 = sphi 0, %s46
    $region4: #{tpu_custom_call.1} parent=1 // loop_header_branch
      %14 = sbr.rel (%p12) target = $region8
    $region5: #{tpu_custom_call.1} parent=1 // loop_body
      %s16 = ssub.s32 %s11, 1
      %s17 = ssub.s32 %s11, 2
      %s18 = sadd.s32 %s11, 1
      %s20 = sadd.s32 %s19, 1
      %p23 = scmp.eq.s32.totalorder %s11, 1
      %p24 = scmp.ne.s32.totalorder %s19, %s21
      %p25 = scmp.eq.s32.totalorder %s11, 0
      %p26 = por %p24, %p25
      %p27 = scmp.ne.s32.totalorder %s19, %s21
      %p28 = scmp.eq.s32.totalorder %s16, 1
      %p29 = por %p27, %p28
      %p30 = scmp.ne.s32.totalorder %s21, %s22
      %p31 = scmp.eq.s32.totalorder %s16, 0
      %p32 = por %p30, %p31
      %p33 = scmp.ne.s32.totalorder %s21, %s22
      %p34 = scmp.eq.s32.totalorder %s17, 1
      %p35 = por %p33, %p34
      %p37 = scmp.ne.s32.totalorder %s22, %s36
      %p38 = scmp.eq.s32.totalorder %s17, 0
      %p39 = por %p37, %p38
      %s40 = ssub.s32 %s11, %s18
      %p41 = scmp.eq.s32.totalorder %s40, 0
      %s43 = sadd.s32 %s42, 1
      %s44 = scalar_select %p41, %s42, %s43
      %p47 = pneg %p41
      %p48 = scmp.eq.s32.totalorder %s11, 1
      %p49 = por %p47, %p48
      %p50 = scmp.ne.s32.totalorder %s42, %s45
      %p51 = scmp.eq.s32.totalorder %s11, 0
      %p52 = por %p50, %p51
      %p53 = scmp.ne.s32.totalorder %s42, %s45
      %p54 = scmp.eq.s32.totalorder %s16, 1
      %p55 = por %p53, %p54
      %p56 = scmp.ne.s32.totalorder %s45, %s46
      %p57 = scmp.eq.s32.totalorder %s16, 0
      %p58 = por %p56, %p57
      %p59 = scmp.ne.s32.totalorder %s45, %s46
      %p60 = scmp.eq.s32.totalorder %s17, 1
      %p61 = por %p59, %p60
      %p63 = scmp.ne.s32.totalorder %s46, %s62
      %p64 = scmp.eq.s32.totalorder %s17, 0
      %p65 = por %p63, %p64
      %p66 = scmp.le.s32.totalorder 1, %s11
      %p67 = scmp.lt.s32.totalorder %s11, 3
      %p68 = pnand %p66, %p67
      %p69 = pneg %p68
      // Predicated region
      $region9: #{tpu_custom_call.1} parent=5 // pred_check
        _
      $region10: #{tpu_custom_call.1} parent=5 // pred_check_branch
        %71 = sbr.rel (%p68) target = $region12
      $region11: #{tpu_custom_call.1} parent=5 // pred_region
        %s72 = ssub.s32 %s11, 1
        // Predicated region
        $region13: #{tpu_custom_call.1} parent=11 // pred_check
          %p73 = pneg %p32
        $region14: #{tpu_custom_call.1} parent=11 // pred_check_branch
          %75 = sbr.rel (%p73) target = $region16
        $region15: #{tpu_custom_call.1} parent=11 // pred_region
          %s77 = ssub.s32 128, 128
          %78 = vsyncadd [#allocation3], %s77
          %s80 = sshll.u32 [#allocation2], 4
          %s81 = int_to_ptr.vmem [resolvable:$true] %s80
          %83 = dma.hbm_to_vmem [thread:$0]  %s0, 128, %s81, [#allocation3]
        $region16: #{tpu_custom_call.1} parent=11 // pred_fallthru
          _
      $region12: #{tpu_custom_call.1} parent=5 // pred_fallthru
        _
      %p84 = scmp.lt.s32.totalorder %s11, 2
      // Predicated region
      $region17: #{tpu_custom_call.1} parent=5 // pred_check
        %p85 = pneg %p84
      $region18: #{tpu_custom_call.1} parent=5 // pred_check_branch
        %87 = sbr.rel (%p85) target = $region20
      $region19: #{tpu_custom_call.1} parent=5 // pred_region
        _
      $region20: #{tpu_custom_call.1} parent=5 // pred_fallthru
        _
      %p88 = scmp.le.s32.totalorder 1, %s11
      %p89 = scmp.lt.s32.totalorder %s11, 3
      %p90 = pnand %p88, %p89
      %p91 = pneg %p90
      // Predicated region
      $region21: #{tpu_custom_call.1} parent=5 // pred_check
        _
      $region22: #{tpu_custom_call.1} parent=5 // pred_check_branch
        %93 = sbr.rel (%p90) target = $region24
      $region23: #{tpu_custom_call.1} parent=5 // pred_region
        %s94 = ssub.s32 %s11, 1
        // Predicated region
        $region25: #{tpu_custom_call.1} parent=23 // pred_check
          %p95 = pneg %p32
        $region26: #{tpu_custom_call.1} parent=23 // pred_check_branch
          %97 = sbr.rel (%p95) target = $region28
        $region27: #{tpu_custom_call.1} parent=23 // pred_region
          %98 = dma.done [#allocation3], 128
        $region28: #{tpu_custom_call.1} parent=23 // pred_fallthru
          _
        %p99 = pneg %p32
        %p100 = pneg %p29
        %p101 = pneg %p58
        %p102 = pneg %p55
        %s103 = sand.u32 %s45, 1
        %s104 = scalar_lea.sflag [#allocation4], %s103
        %s105 = sand.u32 %s45, 1
        %s106 = smul.addr %s105, 8
        %s107 = scalar_lea.vmem [#allocation5], %s106
        %v108 = vld [vmem:[#allocation2] sm:$0xff]
        %v109 = vadd.f32 %v108, 1.0
        %110 = vst [vmem:[%s107] sm:$0xff] %v109
        %s111 = sand.u32 %s45, 1
        %s112 = scalar_lea.sflag [#allocation4], %s111
        %s113 = sand.u32 %s45, 1
        %s114 = smul.addr %s113, 8
        %s115 = scalar_lea.vmem [#allocation5], %s114
        // Predicated region
        $region29: #{tpu_custom_call.1} parent=23 // pred_check
          %p116 = pneg %p55
        $region30: #{tpu_custom_call.1} parent=23 // pred_check_branch
          %118 = sbr.rel (%p116) target = $region32
        $region31: #{tpu_custom_call.1} parent=23 // pred_region
          %s120 = ssub.s32 128, 128
          %121 = vsyncadd %s112, %s120
          %s122 = smul.addr %s16, 128
          %s123 = scalar_lea.hbm %s1, %s122
          %s125 = sshll.u32 %s115, 4
          %s126 = int_to_ptr.vmem [resolvable:$true] %s125
          %128 = dma.vmem_to_hbm [thread:$0]  %s126, 128, %s123, %s112
        $region32: #{tpu_custom_call.1} parent=23 // pred_fallthru
          _
      $region24: #{tpu_custom_call.1} parent=5 // pred_fallthru
        _
      %p129 = scmp.le.s32.totalorder 2, %s11
      // Predicated region
      $region33: #{tpu_custom_call.1} parent=5 // pred_check
        %p130 = pneg %p129
      $region34: #{tpu_custom_call.1} parent=5 // pred_check_branch
        %132 = sbr.rel (%p130) target = $region36
      $region35: #{tpu_custom_call.1} parent=5 // pred_region
        %s133 = ssub.s32 %s11, 2
        // Predicated region
        $region37: #{tpu_custom_call.1} parent=35 // pred_check
          %p134 = pneg %p61
        $region38: #{tpu_custom_call.1} parent=35 // pred_check_branch
          %136 = sbr.rel (%p134) target = $region40
        $region39: #{tpu_custom_call.1} parent=35 // pred_region
          %s137 = sand.u32 %s46, 1
          %s138 = scalar_lea.sflag [#allocation4], %s137
          %s139 = sand.u32 %s46, 1
          %s140 = smul.addr %s139, 8
          %s141 = scalar_lea.vmem [#allocation5], %s140
          %142 = dma.done %s138, 128
        $region40: #{tpu_custom_call.1} parent=35 // pred_fallthru
          _
      $region36: #{tpu_custom_call.1} parent=5 // pred_fallthru
        _
    $region6: #{tpu_custom_call.1} parent=1 // loop_footer
      %s15 = sadd.s32 1, %s11
    $region7: #{tpu_custom_call.1} parent=1 // loop_footer_branch
      %10 = sbr.rel target = $region3
    $region8: #{tpu_custom_call.1} parent=1 // loop_exit
      _
    %143 = vsyncpa [#allocation3], 1
    %s144 = scalar_lea.sflag [#allocation3], 1
    %145 = vsyncpa %s144, 1
    %146 = vsyncpa [#allocation4], 1
    %s147 = scalar_lea.sflag [#allocation4], 1
    %148 = vsyncpa %s147, 1

// kernel: discriminator_forward.1
$region0: #{discriminator_forward.1}
  #allocation0 [shape = 'u32[]', space=smem, size = 0x4, offset = 0x4, fixed_abs, tag = 'smem constant byte address 0x4 - core index']
  #allocation1 [shape = 'u32[144,128]{1,0:T(1,128)}', space=vmem, size = 0x12000, scoped, tag = 'internal scratch']
  #allocation2 [shape = 'f32[1,1]{1,0:T(1,128)S(1)}', space=vmem, size = 0x200, scoped, tag = 'scoped memory for discriminator_forward.1']
  %s0 = inlined_call_operand.vmem [shape: bf16[32,128], index: 0, kind: input, shape index: {}]
  %s1 = inlined_call_operand.vmem [shape: bf16[64,32], index: 1, kind: input, shape index: {}]
  %s2 = inlined_call_operand.vmem [shape: f32[64,1], index: 2, kind: input, shape index: {}]
  %s3 = inlined_call_operand.vmem [shape: bf16[32,64], index: 3, kind: input, shape index: {}]
  %s4 = inlined_call_operand.vmem [shape: f32[32,1], index: 4, kind: input, shape index: {}]
  %s5 = inlined_call_operand.vmem [shape: bf16[16,32], index: 5, kind: input, shape index: {}]
  %s6 = inlined_call_operand.vmem [shape: f32[16,1], index: 6, kind: input, shape index: {}]
  %s7 = inlined_call_operand.vmem [shape: bf16[8,16], index: 7, kind: input, shape index: {}]
  %s8 = inlined_call_operand.vmem [shape: f32[8,1], index: 8, kind: input, shape index: {}]
  %s9 = inlined_call_operand.vmem [shape: f32[8,1], index: 9, kind: input, shape index: {}]
  %s10 = inlined_call_operand.<no memory space> [shape: f32[1,1], index: 10, kind: input, shape index: {}]
  %s11 = inlined_call_operand.vmem [shape: f32[1,128], index: 11, kind: output, shape index: {}]
  %s12 = sld [smem:[#allocation0]]
  $region54: #{discriminator_forward.1} parent=0
    _
  %s14 = ssub.s32 1, %s12
  %s15 = scalar_select 0, %s14, %s12
  %v16 = vstv %s10
  %17 = vst [vmem:[#allocation2] sm:$0x1] %v16
  // Predicated region
  $region2: #{discriminator_forward.1} parent=0 // pred_check
    _
  $region3: #{discriminator_forward.1} parent=0 // pred_check_branch
    %19 = sbr.rel (0) target = $region5
  $region4: #{discriminator_forward.1} parent=0 // pred_region
    _
  $region5: #{discriminator_forward.1} parent=0 // pred_fallthru
    _
  // Predicated region
  $region6: #{discriminator_forward.1} parent=0 // pred_check
    _
  $region7: #{discriminator_forward.1} parent=0 // pred_check_branch
    %21 = sbr.rel (0) target = $region9
  $region8: #{discriminator_forward.1} parent=0 // pred_region
    _
  $region9: #{discriminator_forward.1} parent=0 // pred_fallthru
    _
  // Predicated region
  $region10: #{discriminator_forward.1} parent=0 // pred_check
    _
  $region11: #{discriminator_forward.1} parent=0 // pred_check_branch
    %23 = sbr.rel (0) target = $region13
  $region12: #{discriminator_forward.1} parent=0 // pred_region
    _
  $region13: #{discriminator_forward.1} parent=0 // pred_fallthru
    _
  // Predicated region
  $region14: #{discriminator_forward.1} parent=0 // pred_check
    _
  $region15: #{discriminator_forward.1} parent=0 // pred_check_branch
    %25 = sbr.rel (0) target = $region17
  $region16: #{discriminator_forward.1} parent=0 // pred_region
    _
  $region17: #{discriminator_forward.1} parent=0 // pred_fallthru
    _
  // Predicated region
  $region18: #{discriminator_forward.1} parent=0 // pred_check
    _
  $region19: #{discriminator_forward.1} parent=0 // pred_check_branch
    %27 = sbr.rel (0) target = $region21
  $region20: #{discriminator_forward.1} parent=0 // pred_region
    _
  $region21: #{discriminator_forward.1} parent=0 // pred_fallthru
    _
  // Predicated region
  $region22: #{discriminator_forward.1} parent=0 // pred_check
    _
  $region23: #{discriminator_forward.1} parent=0 // pred_check_branch
    %29 = sbr.rel (0) target = $region25
  $region24: #{discriminator_forward.1} parent=0 // pred_region
    _
  $region25: #{discriminator_forward.1} parent=0 // pred_fallthru
    _
  // Predicated region
  $region26: #{discriminator_forward.1} parent=0 // pred_check
    _
  $region27: #{discriminator_forward.1} parent=0 // pred_check_branch
    %31 = sbr.rel (0) target = $region29
  $region28: #{discriminator_forward.1} parent=0 // pred_region
    _
  $region29: #{discriminator_forward.1} parent=0 // pred_fallthru
    _
  // Predicated region
  $region30: #{discriminator_forward.1} parent=0 // pred_check
    _
  $region31: #{discriminator_forward.1} parent=0 // pred_check_branch
    %33 = sbr.rel (0) target = $region33
  $region32: #{discriminator_forward.1} parent=0 // pred_region
    _
  $region33: #{discriminator_forward.1} parent=0 // pred_fallthru
    _
  // Predicated region
  $region34: #{discriminator_forward.1} parent=0 // pred_check
    _
  $region35: #{discriminator_forward.1} parent=0 // pred_check_branch
    %35 = sbr.rel (0) target = $region37
  $region36: #{discriminator_forward.1} parent=0 // pred_region
    _
  $region37: #{discriminator_forward.1} parent=0 // pred_fallthru
    _
  // Predicated region
  $region38: #{discriminator_forward.1} parent=0 // pred_check
    _
  $region39: #{discriminator_forward.1} parent=0 // pred_check_branch
    %37 = sbr.rel (0) target = $region41
  $region40: #{discriminator_forward.1} parent=0 // pred_region
    _
  $region41: #{discriminator_forward.1} parent=0 // pred_fallthru
    _
  // Predicated region
  $region42: #{discriminator_forward.1} parent=0 // pred_check
    _
  $region43: #{discriminator_forward.1} parent=0 // pred_check_branch
    %39 = sbr.rel (0) target = $region45
  $region44: #{discriminator_forward.1} parent=0 // pred_region
    _
  $region45: #{discriminator_forward.1} parent=0 // pred_fallthru
    _
  %v41 = vld [vmem:[%s1] sm:$0xf]
  %v42 = vld [vmem:[%s1 + $0x4] sm:$0xf]
  %v43 = vld [vmem:[%s1 + $0x8] sm:$0xf]
  %v44 = vld [vmem:[%s1 + $0xc] sm:$0xf]
  %v45 = vld [vmem:[%s1 + $0x10] sm:$0xf]
  %v46 = vld [vmem:[%s1 + $0x14] sm:$0xf]
  %v47 = vld [vmem:[%s1 + $0x18] sm:$0xf]
  %v48 = vld [vmem:[%s1 + $0x1c] sm:$0xf]
  %v49 = vld [vmem:[%s0] sm:$0xf]
  %v50 = vld [vmem:[%s0 + $0x4] sm:$0xf]
  %v51 = vld [vmem:[%s0 + $0x8] sm:$0xf]
  %v52 = vld [vmem:[%s0 + $0xc] sm:$0xf]
  %v53 = vld [vmem:[%s2] sm:$0xff]
  %v54 = vld [vmem:[%s2 + $0x8] sm:$0xff]
  %v55 = vld [vmem:[%s2 + $0x10] sm:$0xff]
  %v56 = vld [vmem:[%s2 + $0x18] sm:$0xff]
  %v57 = vld [vmem:[%s2 + $0x20] sm:$0xff]
  %v58 = vld [vmem:[%s2 + $0x28] sm:$0xff]
  %v59 = vld [vmem:[%s2 + $0x30] sm:$0xff]
  %v60 = vld [vmem:[%s2 + $0x38] sm:$0xff]
  %62 = vset.pattern.permute.xlu0 0
  %63 = vperm.xlu0 %62, %v53
  %v64 = vpop.permute.xlu0 %63
  %67 = vset.pattern.permute.xlu0 0
  %68 = vperm.xlu0 %67, %v54
  %v69 = vpop.permute.xlu0 %68
  %72 = vset.pattern.permute.xlu0 0
  %73 = vperm.xlu0 %72, %v55
  %v74 = vpop.permute.xlu0 %73
  %77 = vset.pattern.permute.xlu0 0
  %78 = vperm.xlu0 %77, %v56
  %v79 = vpop.permute.xlu0 %78
  %82 = vset.pattern.permute.xlu0 0
  %83 = vperm.xlu0 %82, %v57
  %v84 = vpop.permute.xlu0 %83
  %87 = vset.pattern.permute.xlu0 0
  %88 = vperm.xlu0 %87, %v58
  %v89 = vpop.permute.xlu0 %88
  %92 = vset.pattern.permute.xlu0 0
  %93 = vperm.xlu0 %92, %v59
  %v94 = vpop.permute.xlu0 %93
  %97 = vset.pattern.permute.xlu0 0
  %98 = vperm.xlu0 %97, %v60
  %v99 = vpop.permute.xlu0 %98
  %v109 = vunpack.c.l.b16 %v41
  %v110 = vunpack.c.l.b16 %v42
  %v111 = vunpack.c.l.b16 %v43
  %v112 = vunpack.c.l.b16 %v44
  %v113 = vunpack.c.l.b16 %v45
  %v114 = vunpack.c.l.b16 %v46
  %v115 = vunpack.c.l.b16 %v47
  %v116 = vunpack.c.l.b16 %v48
  %v117 = vpack.c.b16 %v110, %v109
  %v118 = vpack.c.b16 %v112, %v111
  %v119 = vpack.c.b16 %v114, %v113
  %v120 = vpack.c.b16 %v116, %v115
  %v125 = vunpack.c.l.b16 %v49
  %v126 = vunpack.c.l.b16 %v50
  %v127 = vunpack.c.l.b16 %v51
  %v128 = vunpack.c.l.b16 %v52
  %v129 = vpack.c.b16 %v126, %v125
  %v130 = vpack.c.b16 %v128, %v127
  %vm133 = vcmask 261120
  %v135 = vsel %vm133, %v117, 0
  %v138 = vsel %vm133, %v118, 0
  %v141 = vsel %vm133, %v119, 0
  %v144 = vsel %vm133, %v120, 0
  %146 = vmatprep.subr.bf16.mxu0 0
  %147 = vmatpush1.bf16.msra.mxu0 %v129
  %148 = vmatprep.subr.bf16.mxu0 0
  %149 = vmatpush1.bf16.msra.mxu0 %v130
  %150 = vmatprep.subr.bf16.mxu0 0
  %151 = vmatpush1.bf16.msra.mxu0 0
  %152 = vmatprep.subr.bf16.mxu0 0
  %153 = vmatpush1.bf16.msra.mxu0 0
  %154 = vmatprep.subr.bf16.mxu0 0
  %155 = vmatpush1.bf16.msra.mxu0 0
  %156 = vmatprep.subr.bf16.mxu0 0
  %157 = vmatpush1.bf16.msra.mxu0 0
  %158 = vmatprep.subr.bf16.mxu0 0
  %159 = vmatpush1.bf16.msra.mxu0 0
  %160 = vmatprep.subr.bf16.mxu0 0
  %161 = vmatpush1.bf16.msra.mxu0 0
  %162 = vmatprep.subr.bf16.mxu0 0
  %163 = vmatpush1.bf16.msra.mxu0 0
  %164 = vmatprep.subr.bf16.mxu0 0
  %165 = vmatpush1.bf16.msra.mxu0 0
  %166 = vmatprep.subr.bf16.mxu0 0
  %167 = vmatpush1.bf16.msra.mxu0 0
  %168 = vmatprep.subr.bf16.mxu0 0
  %169 = vmatpush1.bf16.msra.mxu0 0
  %170 = vmatprep.subr.bf16.mxu0 0
  %171 = vmatpush1.bf16.msra.mxu0 0
  %172 = vmatprep.subr.bf16.mxu0 0
  %173 = vmatpush1.bf16.msra.mxu0 0
  %174 = vmatprep.subr.bf16.mxu0 0
  %175 = vmatpush1.bf16.msra.mxu0 0
  %176 = vmatprep.subr.bf16.mxu0 0
  %177 = vmatpush1.bf16.msra.mxu0 0
  %178 = vmatprep.mubr.bf16.mxu0 0
  %179 = vmatmul.mubr.bf16.gmra.mrb[0].mxu0 %v135
  %v180 = vpop.f32.mrb[0].mxu0
  %v181 = vadd.f32 %v64, %v180
  %v182 = vpop.f32.mrb[0].mxu0
  %v183 = vpop.f32.mrb[0].mxu0
  %v184 = vadd.f32 %v69, %v183
  %v185 = vpop.f32.mrb[0].mxu0
  %186 = vmatprep.mubr.bf16.mxu0 0
  %187 = vmatmul.mubr.bf16.gmra.mrb[0].mxu0 %v138
  %v188 = vpop.f32.mrb[0].mxu0
  %v189 = vadd.f32 %v74, %v188
  %v190 = vpop.f32.mrb[0].mxu0
  %v191 = vpop.f32.mrb[0].mxu0
  %v192 = vadd.f32 %v79, %v191
  %v193 = vpop.f32.mrb[0].mxu0
  %194 = vmatprep.mubr.bf16.mxu0 0
  %195 = vmatmul.mubr.bf16.gmra.mrb[0].mxu0 %v141
  %v196 = vpop.f32.mrb[0].mxu0
  %v197 = vadd.f32 %v84, %v196
  %v198 = vpop.f32.mrb[0].mxu0
  %v199 = vpop.f32.mrb[0].mxu0
  %v200 = vadd.f32 %v89, %v199
  %v201 = vpop.f32.mrb[0].mxu0
  %202 = vmatprep.mubr.bf16.mxu0 0
  %203 = vmatmul.mubr.bf16.gmra.mrb[0].mxu0 %v144
  %v204 = vpop.f32.mrb[0].mxu0
  %v205 = vadd.f32 %v94, %v204
  %v206 = vpop.f32.mrb[0].mxu0
  %v207 = vpop.f32.mrb[0].mxu0
  %v208 = vadd.f32 %v99, %v207
  %v209 = vpop.f32.mrb[0].mxu0
  %210 = vdwg.mxu0
  %v211 = vmul.f32 %v181, 0.1
  %v212 = vmul.f32 %v184, 0.1
  %v213 = vmul.f32 %v189, 0.1
  %v214 = vmul.f32 %v192, 0.1
  %v215 = vmul.f32 %v197, 0.1
  %v216 = vmul.f32 %v200, 0.1
  %v217 = vmul.f32 %v205, 0.1
  %v218 = vmul.f32 %v208, 0.1
  %v219 = vmax.f32 %v181, %v211
  %v220 = vmax.f32 %v184, %v212
  %v221 = vmax.f32 %v189, %v213
  %v222 = vmax.f32 %v192, %v214
  %v223 = vmax.f32 %v197, %v215
  %v224 = vmax.f32 %v200, %v216
  %v225 = vmax.f32 %v205, %v217
  %v226 = vmax.f32 %v208, %v218
  %v227 = vld [vmem:[%s3] sm:$0xf]
  %v228 = vld [vmem:[%s3 + $0x4] sm:$0xf]
  %v229 = vld [vmem:[%s3 + $0x8] sm:$0xf]
  %v230 = vld [vmem:[%s3 + $0xc] sm:$0xf]
  %v231 = vpack.c.bf16 %v220, %v219
  %v232 = vpack.c.bf16 %v222, %v221
  %v233 = vpack.c.bf16 %v224, %v223
  %v234 = vpack.c.bf16 %v226, %v225
  %v235 = vld [vmem:[%s4] sm:$0xff]
  %v236 = vld [vmem:[%s4 + $0x8] sm:$0xff]
  %v237 = vld [vmem:[%s4 + $0x10] sm:$0xff]
  %v238 = vld [vmem:[%s4 + $0x18] sm:$0xff]
  %240 = vset.pattern.permute.xlu0 0
  %241 = vperm.xlu0 %240, %v235
  %v242 = vpop.permute.xlu0 %241
  %245 = vset.pattern.permute.xlu0 0
  %246 = vperm.xlu0 %245, %v236
  %v247 = vpop.permute.xlu0 %246
  %250 = vset.pattern.permute.xlu0 0
  %251 = vperm.xlu0 %250, %v237
  %v252 = vpop.permute.xlu0 %251
  %255 = vset.pattern.permute.xlu0 0
  %256 = vperm.xlu0 %255, %v238
  %v257 = vpop.permute.xlu0 %256
  %v263 = vunpack.c.l.b16 %v227
  %v264 = vunpack.c.l.b16 %v228
  %v265 = vunpack.c.l.b16 %v229
  %v266 = vunpack.c.l.b16 %v230
  %v267 = vpack.c.b16 %v264, %v263
  %v268 = vpack.c.b16 %v266, %v265
  %vm269 = vcmask 523264
  %v271 = vsel %vm269, %v267, 0
  %v274 = vsel %vm269, %v268, 0
  %276 = vmatprep.subr.bf16.mxu0 0
  %277 = vmatpush1.bf16.msra.mxu0 %v231
  %278 = vmatprep.subr.bf16.mxu0 0
  %279 = vmatpush1.bf16.msra.mxu0 %v232
  %280 = vmatprep.subr.bf16.mxu0 0
  %281 = vmatpush1.bf16.msra.mxu0 %v233
  %282 = vmatprep.subr.bf16.mxu0 0
  %283 = vmatpush1.bf16.msra.mxu0 %v234
  %284 = vmatprep.subr.bf16.mxu0 0
  %285 = vmatpush1.bf16.msra.mxu0 0
  %286 = vmatprep.subr.bf16.mxu0 0
  %287 = vmatpush1.bf16.msra.mxu0 0
  %288 = vmatprep.subr.bf16.mxu0 0
  %289 = vmatpush1.bf16.msra.mxu0 0
  %290 = vmatprep.subr.bf16.mxu0 0
  %291 = vmatpush1.bf16.msra.mxu0 0
  %292 = vmatprep.subr.bf16.mxu0 0
  %293 = vmatpush1.bf16.msra.mxu0 0
  %294 = vmatprep.subr.bf16.mxu0 0
  %295 = vmatpush1.bf16.msra.mxu0 0
  %296 = vmatprep.subr.bf16.mxu0 0
  %297 = vmatpush1.bf16.msra.mxu0 0
  %298 = vmatprep.subr.bf16.mxu0 0
  %299 = vmatpush1.bf16.msra.mxu0 0
  %300 = vmatprep.subr.bf16.mxu0 0
  %301 = vmatpush1.bf16.msra.mxu0 0
  %302 = vmatprep.subr.bf16.mxu0 0
  %303 = vmatpush1.bf16.msra.mxu0 0
  %304 = vmatprep.subr.bf16.mxu0 0
  %305 = vmatpush1.bf16.msra.mxu0 0
  %306 = vmatprep.subr.bf16.mxu0 0
  %307 = vmatpush1.bf16.msra.mxu0 0
  %308 = vmatprep.mubr.bf16.mxu0 0
  %309 = vmatmul.mubr.bf16.gmra.mrb[0].mxu0 %v271
  %v310 = vpop.f32.mrb[0].mxu0
  %v311 = vadd.f32 %v242, %v310
  %v312 = vpop.f32.mrb[0].mxu0
  %v313 = vpop.f32.mrb[0].mxu0
  %v314 = vadd.f32 %v247, %v313
  %v315 = vpop.f32.mrb[0].mxu0
  %316 = vmatprep.mubr.bf16.mxu0 0
  %317 = vmatmul.mubr.bf16.gmra.mrb[0].mxu0 %v274
  %v318 = vpop.f32.mrb[0].mxu0
  %v319 = vadd.f32 %v252, %v318
  %v320 = vpop.f32.mrb[0].mxu0
  %v321 = vpop.f32.mrb[0].mxu0
  %v322 = vadd.f32 %v257, %v321
  %v323 = vpop.f32.mrb[0].mxu0
  %324 = vdwg.mxu0
  %v325 = vmul.f32 %v311, 0.1
  %v326 = vmul.f32 %v314, 0.1
  %v327 = vmul.f32 %v319, 0.1
  %v328 = vmul.f32 %v322, 0.1
  %v329 = vmax.f32 %v311, %v325
  %v330 = vmax.f32 %v314, %v326
  %v331 = vmax.f32 %v319, %v327
  %v332 = vmax.f32 %v322, %v328
  %v333 = vld [vmem:[%s5] sm:$0xf]
  %v334 = vld [vmem:[%s5 + $0x4] sm:$0xf]
  %v335 = vpack.c.bf16 %v330, %v329
  %v336 = vpack.c.bf16 %v332, %v331
  %v337 = vld [vmem:[%s6] sm:$0xff]
  %v338 = vld [vmem:[%s6 + $0x8] sm:$0xff]
  %340 = vset.pattern.permute.xlu0 0
  %341 = vperm.xlu0 %340, %v337
  %v342 = vpop.permute.xlu0 %341
  %345 = vset.pattern.permute.xlu0 0
  %346 = vperm.xlu0 %345, %v338
  %v347 = vpop.permute.xlu0 %346
  %v351 = vunpack.c.l.b16 %v333
  %v352 = vunpack.c.l.b16 %v334
  %v353 = vpack.c.b16 %v352, %v351
  %v355 = vsel %vm133, %v353, 0
  %357 = vmatprep.subr.bf16.mxu0 0
  %358 = vmatpush1.bf16.msra.mxu0 %v335
  %359 = vmatprep.subr.bf16.mxu0 0
  %360 = vmatpush1.bf16.msra.mxu0 %v336
  %361 = vmatprep.subr.bf16.mxu0 0
  %362 = vmatpush1.bf16.msra.mxu0 0
  %363 = vmatprep.subr.bf16.mxu0 0
  %364 = vmatpush1.bf16.msra.mxu0 0
  %365 = vmatprep.subr.bf16.mxu0 0
  %366 = vmatpush1.bf16.msra.mxu0 0
  %367 = vmatprep.subr.bf16.mxu0 0
  %368 = vmatpush1.bf16.msra.mxu0 0
  %369 = vmatprep.subr.bf16.mxu0 0
  %370 = vmatpush1.bf16.msra.mxu0 0
  %371 = vmatprep.subr.bf16.mxu0 0
  %372 = vmatpush1.bf16.msra.mxu0 0
  %373 = vmatprep.subr.bf16.mxu0 0
  %374 = vmatpush1.bf16.msra.mxu0 0
  %375 = vmatprep.subr.bf16.mxu0 0
  %376 = vmatpush1.bf16.msra.mxu0 0
  %377 = vmatprep.subr.bf16.mxu0 0
  %378 = vmatpush1.bf16.msra.mxu0 0
  %379 = vmatprep.subr.bf16.mxu0 0
  %380 = vmatpush1.bf16.msra.mxu0 0
  %381 = vmatprep.subr.bf16.mxu0 0
  %382 = vmatpush1.bf16.msra.mxu0 0
  %383 = vmatprep.subr.bf16.mxu0 0
  %384 = vmatpush1.bf16.msra.mxu0 0
  %385 = vmatprep.subr.bf16.mxu0 0
  %386 = vmatpush1.bf16.msra.mxu0 0
  %387 = vmatprep.subr.bf16.mxu0 0
  %388 = vmatpush1.bf16.msra.mxu0 0
  %389 = vmatprep.mubr.bf16.mxu0 0
  %390 = vmatmul.mubr.bf16.gmra.mrb[0].mxu0 %v355
  %v391 = vpop.f32.mrb[0].mxu0
  %v392 = vadd.f32 %v342, %v391
  %v393 = vpop.f32.mrb[0].mxu0
  %v394 = vpop.f32.mrb[0].mxu0
  %v395 = vadd.f32 %v347, %v394
  %v396 = vpop.f32.mrb[0].mxu0
  %397 = vdwg.mxu0
  %v398 = vmul.f32 %v392, 0.1
  %v399 = vmul.f32 %v395, 0.1
  %v400 = vmax.f32 %v392, %v398
  %v401 = vmax.f32 %v395, %v399
  %v402 = vld [vmem:[%s7] sm:$0xf]
  %v403 = vpack.c.bf16 %v401, %v400
  %v404 = vld [vmem:[%s8] sm:$0xff]
  %406 = vset.pattern.permute.xlu0 0
  %407 = vperm.xlu0 %406, %v404
  %v408 = vpop.permute.xlu0 %407
  %vm410 = vcmask 130048
  %v412 = vsel %vm410, %v402, 0
  %414 = vmatprep.subr.bf16.mxu0 0
  %415 = vmatpush1.bf16.msra.mxu0 %v403
  %416 = vmatprep.subr.bf16.mxu0 0
  %417 = vmatpush1.bf16.msra.mxu0 0
  %418 = vmatprep.subr.bf16.mxu0 0
  %419 = vmatpush1.bf16.msra.mxu0 0
  %420 = vmatprep.subr.bf16.mxu0 0
  %421 = vmatpush1.bf16.msra.mxu0 0
  %422 = vmatprep.subr.bf16.mxu0 0
  %423 = vmatpush1.bf16.msra.mxu0 0
  %424 = vmatprep.subr.bf16.mxu0 0
  %425 = vmatpush1.bf16.msra.mxu0 0
  %426 = vmatprep.subr.bf16.mxu0 0
  %427 = vmatpush1.bf16.msra.mxu0 0
  %428 = vmatprep.subr.bf16.mxu0 0
  %429 = vmatpush1.bf16.msra.mxu0 0
  %430 = vmatprep.subr.bf16.mxu0 0
  %431 = vmatpush1.bf16.msra.mxu0 0
  %432 = vmatprep.subr.bf16.mxu0 0
  %433 = vmatpush1.bf16.msra.mxu0 0
  %434 = vmatprep.subr.bf16.mxu0 0
  %435 = vmatpush1.bf16.msra.mxu0 0
  %436 = vmatprep.subr.bf16.mxu0 0
  %437 = vmatpush1.bf16.msra.mxu0 0
  %438 = vmatprep.subr.bf16.mxu0 0
  %439 = vmatpush1.bf16.msra.mxu0 0
  %440 = vmatprep.subr.bf16.mxu0 0
  %441 = vmatpush1.bf16.msra.mxu0 0
  %442 = vmatprep.subr.bf16.mxu0 0
  %443 = vmatpush1.bf16.msra.mxu0 0
  %444 = vmatprep.subr.bf16.mxu0 0
  %445 = vmatpush1.bf16.msra.mxu0 0
  %446 = vmatprep.mubr.bf16.mxu0 0
  %447 = vmatmul.mubr.bf16.gmra.mrb[0].mxu0 %v412
  %v448 = vpop.f32.mrb[0].mxu0
  %v449 = vadd.f32 %v408, %v448
  %v450 = vpop.f32.mrb[0].mxu0
  %v451 = vpop.f32.mrb[0].mxu0
  %v452 = vpop.f32.mrb[0].mxu0
  %453 = vdwg.mxu0
  %v454 = vmul.f32 %v449, 0.1
  %v455 = vmax.f32 %v449, %v454
  %v456 = vld [vmem:[%s9] sm:$0xff]
  %458 = vset.pattern.permute.xlu0 0
  %459 = vperm.xlu0 %458, %v456
  %v460 = vpop.permute.xlu0 %459
  %v462 = vmul.f32 %v460, %v455
  %v463 = vrot.slane %v462, 4
  %v464 = vadd.f32 %v462, %v463
  %v465 = vrot.slane %v464, 2
  %v466 = vadd.f32 %v464, %v465
  %v467 = vrot.slane %v466, 1
  %v468 = vadd.f32 %v466, %v467
  %v469 = vld [vmem:[#allocation2] sm:$0x1]
  %471 = vset.pattern.permute.xlu0 0
  %472 = vperm.xlu0 %471, %v469
  %v473 = vpop.permute.xlu0 %472
  %v475 = vlaneseq
  %v476 = vshrl.u32 %v475, 7
  %v477 = vsub.s32 0, %v476
  %v478 = vrot.slane %v473, %v477
  %v479 = vadd.f32 %v468, %v478
  %v480 = vxor.u32 %v479, 2147483648
  %v481 = vmul.f32 %v480, 1.442695
  %v482 = vpow.pop %v481
  %v483 = vadd.f32 %v482, 1.0
  %v484 = vrcp.pop %v483
  %v485 = vmul.f32 1.0, %v484
  %486 = vst [vmem:[%s11] sm:$0x1] %v485
  // Predicated region
  $region46: #{discriminator_forward.1} parent=0 // pred_check
    _
  $region47: #{discriminator_forward.1} parent=0 // pred_check_branch
    %488 = sbr.rel (0) target = $region49
  $region48: #{discriminator_forward.1} parent=0 // pred_region
    _
  $region49: #{discriminator_forward.1} parent=0 // pred_fallthru
    _
  // Predicated region
  $region50: #{discriminator_forward.1} parent=0 // pred_check
    _
  $region51: #{discriminator_forward.1} parent=0 // pred_check_branch
    %490 = sbr.rel (0) target = $region53
  $region52: #{discriminator_forward.1} parent=0 // pred_region
    _
  $region53: #{discriminator_forward.1} parent=0 // pred_fallthru
    _

</llo_original>
